<compile_context>
chip_gen: v7x
topology: tpu7x:2x2x1
jax: 0.10.0
libtpu: 0.0.40
codegen_flags: <defaults>
</compile_context>

<pallas_src>
import jax
import jax.numpy as jnp
from jax.experimental import pallas as pl
from jax.experimental.pallas import tpu as pltpu


def identity_kernel(x_ref, o_ref):
    # Pure passthrough: copy the VMEM tile.
    o_ref[...] = x_ref[...]


def _pallas_copy(x: jax.Array) -> jax.Array:
    """Materialized identity copy through a Pallas kernel (new HBM buffer)."""
    orig_shape = x.shape
    dtype = x.dtype
    itemsize = jnp.dtype(dtype).itemsize
    # Packed sublane count: 8 rows for 32-bit, 16 for 16-bit, 32 for 8-bit.
    packed_sublane = max(8, 8 * (4 // itemsize))

    flat = x.reshape(-1)  # contiguous collapse: free (no HBM copy) in XLA
    n = flat.shape[0]
    if n == 0:
        return x

    if n % 128 != 0:
        # Rare ragged case: run the whole array through VMEM as a single block
        # (block dims equal to the full array dims are always legal).
        # TODO(synk): arrays too large for VMEM with n % 128 != 0 would need
        # tail-block handling; typical NN tensors never hit this path.
        out = pl.pallas_call(
            identity_kernel,
            out_shape=jax.ShapeDtypeStruct((1, n), dtype),
        )(flat.reshape(1, n))
        return out.reshape(orig_shape)

    # Lane-dense 2D view: widest last dim (multiple of 128) that divides n.
    ncols = 128
    for cand in (2048, 1024, 512, 256):
        if n % cand == 0:
            ncols = cand
            break
    nrows = n // ncols
    x2d = flat.reshape(nrows, ncols)  # also free (contiguous reshape)

    # ~4 MiB blocks: big enough to keep the DMA/HBM interface saturated, small
    # enough that double-buffered in+out (4x block = 16 MiB) fits every
    # generation's VMEM (v7x physical is 64 MiB).
    target_block_bytes = 4 * 1024 * 1024
    tile_r = target_block_bytes // (ncols * itemsize)
    tile_r = max(packed_sublane, (tile_r // packed_sublane) * packed_sublane)
    if tile_r >= nrows:
        tile_r = nrows  # single full-extent block along rows (always legal)

    out2d = pl.pallas_call(
        identity_kernel,
        out_shape=jax.ShapeDtypeStruct((nrows, ncols), dtype),
        grid_spec=pltpu.PrefetchScalarGridSpec(
            num_scalar_prefetch=0,
            # cdiv grid: no divisor search; Pallas pads the ragged last block.
            grid=(pl.cdiv(nrows, tile_r),),
            in_specs=[pl.BlockSpec((tile_r, ncols), lambda i: (i, 0))],
            out_specs=pl.BlockSpec((tile_r, ncols), lambda i: (i, 0)),
        ),
        compiler_params=pltpu.CompilerParams(
            dimension_semantics=("parallel",),   # v7x: shard rows over 2 TCs
            vmem_limit_bytes=32 * 1024 * 1024,   # safe on v5e/v6e/v7x
        ),
    )(x2d)

    return out2d.reshape(orig_shape)


def identity(x: jax.Array, *, copy: bool = False) -> jax.Array:
    """Identity forward pass.

    Default (copy=False) matches torch.nn Identity semantics exactly and moves
    zero bytes: the input is returned as-is.  copy=True forces a materialized
    copy through the Pallas kernel (for when a fresh buffer is required).
    """
    if not copy:
        return x
    return _pallas_copy(x)


if __name__ == "__main__":
    key = jax.random.PRNGKey(0)
    x = jax.random.normal(key, (2, 4, 16, 16), dtype=jnp.float32)  # NCHW

    # Fast path: true identity, zero HBM traffic.
    y_fast = identity(x)
    assert y_fast is x

    # Pallas kernel path: explicit copy, exercised once for the check.
    y = identity(x, copy=True)
    jax.block_until_ready(y)
    assert y.shape == x.shape and y.dtype == x.dtype
    assert bool(jnp.all(y == x))
    print("KERNEL_OK")
</pallas_src>

<mosaic_0001>
module attributes {stable_mosaic.version = 11 : i64} {
  func.func @identity_kernel(%arg0: i32, %arg1: memref<1x2048xf32, #tpu.memory_space<vmem>>, %arg2: memref<1x2048xf32, #tpu.memory_space<vmem>>) attributes {dimension_semantics = [#tpu.dimension_semantics<parallel>], iteration_bounds = array<i64: 1>, scalar_prefetch = 0 : i64, scratch_operands = 0 : i64, tpu.core_type = #tpu.core_type<tc>, window_params = [{transform_indices = @transform_0, window_bounds = array<i64: 1, 2048>}, {transform_indices = @transform_1, window_bounds = array<i64: 1, 2048>}]} {
    %c0 = arith.constant 0 : index
    %c0_0 = arith.constant 0 : index
    %0 = vector.load %arg1[%c0, %c0_0] : memref<1x2048xf32, #tpu.memory_space<vmem>>, vector<1x2048xf32>
    %c0_1 = arith.constant 0 : index
    %c0_2 = arith.constant 0 : index
    %1 = vector.load %arg2[%c0_1, %c0_2] : memref<1x2048xf32, #tpu.memory_space<vmem>>, vector<1x2048xf32>
    tpu.vector_store %arg2[%c0_1, %c0_2], %0 {strides = array<i32>} : memref<1x2048xf32, #tpu.memory_space<vmem>>, vector<1x2048xf32>,
    return
  }
  func.func @transform_0(%arg0: i32) -> (i32, i32) {
    %c0_i32 = arith.constant 0 : i32
    %c0_i32_0 = arith.constant 0 : i32
    return %arg0, %c0_i32 : i32, i32
  }
  func.func @transform_1(%arg0: i32) -> (i32, i32) {
    %c0_i32 = arith.constant 0 : i32
    %c0_i32_0 = arith.constant 0 : i32
    return %arg0, %c0_i32 : i32, i32
  }
}

</mosaic_0001>

<llo_original>
// kernel: tpu_custom_call.1
$region0: #{tpu_custom_call.1}
  #allocation0 [shape = 'u32[]', space=smem, size = 0x4, offset = 0x4, fixed_abs, tag = 'smem constant byte address 0x4 - core index']
  #allocation1 [shape = 'u32[144,128]{1,0:T(1,128)}', space=vmem, size = 0x12000, scoped, tag = 'internal scratch']
  %s0 = inlined_call_operand.hbm [shape: f32[1,2048], index: 0, kind: input, shape index: {}]
  %s1 = inlined_call_operand.hbm [shape: f32[1,2048], index: 1, kind: output, shape index: {}]
  %s2 = sld [smem:[#allocation0]]
  $region18: #{tpu_custom_call.1} parent=0
    _
  %s4 = ssub.s32 1, %s2
  %s5 = scalar_select 0, %s4, %s2
  $region1: #{tpu_custom_call.1} parent=0
    #allocation2 [shape = 'u8[8192]{0}', space=vmem, size = 0x2000, scoped, tag = 'input window, operand 0, single buffered']
    #allocation3 [shape = 's32[1]{0}', space=sflag, size = 0x4, scoped, tag = 'scoped memory for tpu_custom_call.1']
    #allocation4 [shape = 's32[1]{0}', space=sflag, size = 0x4, scoped, tag = 'scoped memory for tpu_custom_call.1']
    #allocation5 [shape = 'u8[8192]{0}', space=vmem, size = 0x2000, scoped, tag = 'output window, operand 0, single buffered']
    %6 = vsyncpa [#allocation3], 0
    %7 = vsyncpa [#allocation4], 0
    // Predicated region
    $region2: #{tpu_custom_call.1} parent=1 // pred_check
      _
    $region3: #{tpu_custom_call.1} parent=1 // pred_check_branch
      %9 = sbr.rel (0) target = $region5
    $region4: #{tpu_custom_call.1} parent=1 // pred_region
      %s11 = ssub.s32 256, 256
      %12 = vsyncadd [#allocation3], %s11
      %s14 = sshll.u32 [#allocation2], 4
      %s15 = int_to_ptr.vmem [resolvable:$true] %s14
      %17 = dma.hbm_to_vmem [thread:$0]  %s0, 256, %s15, [#allocation3]
    $region5: #{tpu_custom_call.1} parent=1 // pred_fallthru
      _
    // Predicated region
    $region6: #{tpu_custom_call.1} parent=1 // pred_check
      _
    $region7: #{tpu_custom_call.1} parent=1 // pred_check_branch
      %19 = sbr.rel (0) target = $region9
    $region8: #{tpu_custom_call.1} parent=1 // pred_region
      %20 = dma.done [#allocation3], 256
    $region9: #{tpu_custom_call.1} parent=1 // pred_fallthru
      _
    %v21 = vld [vmem:[#allocation2] sm:$0xff]
    %v22 = vld [vmem:[#allocation2 + $0x8] sm:$0xff]
    %23 = vst [vmem:[#allocation5] sm:$0xff] %v21
    %24 = vst [vmem:[#allocation5 + $0x8] sm:$0xff] %v22
    // Predicated region
    $region10: #{tpu_custom_call.1} parent=1 // pred_check
      _
    $region11: #{tpu_custom_call.1} parent=1 // pred_check_branch
      %26 = sbr.rel (0) target = $region13
    $region12: #{tpu_custom_call.1} parent=1 // pred_region
      %s28 = ssub.s32 256, 256
      %29 = vsyncadd [#allocation4], %s28
      %s31 = sshll.u32 [#allocation5], 4
      %s32 = int_to_ptr.vmem [resolvable:$true] %s31
      %34 = dma.vmem_to_hbm [thread:$0]  %s32, 256, %s1, [#allocation4]
    $region13: #{tpu_custom_call.1} parent=1 // pred_fallthru
      _
    // Predicated region
    $region14: #{tpu_custom_call.1} parent=1 // pred_check
      _
    $region15: #{tpu_custom_call.1} parent=1 // pred_check_branch
      %36 = sbr.rel (0) target = $region17
    $region16: #{tpu_custom_call.1} parent=1 // pred_region
      %37 = dma.done [#allocation4], 256
    $region17: #{tpu_custom_call.1} parent=1 // pred_fallthru
      _
    %38 = vsyncpa [#allocation3], 1
    %39 = vsyncpa [#allocation4], 1

</llo_original>
